<compile_context>
chip_gen: v7x
topology: tpu7x:2x2x1
jax: 0.10.0
libtpu: 0.0.40
codegen_flags: <defaults>
</compile_context>

<pallas_src>
import functools

import jax
import jax.numpy as jnp
from jax.experimental import pallas as pl
from jax.experimental.pallas import tpu as pltpu


# ----------------------------- model dimensions -----------------------------
HIDDEN = 32
N_GOAL = 2
N_DELTA_GPS = 2
N_COMPASS = 2
N_ACT = 5                 # prev-action embedding table size
N_BUMP = 2                # bump embedding table size
N_FEAT = N_GOAL + N_DELTA_GPS + N_COMPASS + N_ACT + N_BUMP     # 13
RNN_INPUT = 5 * 32        # original GRU input width (160)
G4 = 4 * HIDDEN           # 128 fused gate rows: [r_pre | z_pre | gi_n | gh_n]

# Single-step input slab rows (features on sublanes, batch on lanes):
SS_H0 = 0                       # rows  0:32  masked hidden
SS_FEAT = HIDDEN                # rows 32:45  fused features
SS_ONES = SS_FEAT + N_FEAT      # row  45     ones (bias row)
SS_ROWS = 48                    # rows 46:48  zero pad (sublane alignment)

# Sequence-mode per-step obs slab rows:
SQ_FEAT = 0                     # rows  0:13  fused features
SQ_ONES = N_FEAT                # row  13     ones (bias row)
SQ_MASK = N_FEAT + 1            # row  14     mask
SQ_ROWS = 16                    # row  15     zero pad

CRITIC_ROWS = 40                # rows 0:32 critic_w, row 32 critic_b, pad->40

LANE = 128

# Host-side (exact) matmul for weight fusion / reference.
_hdot = functools.partial(jnp.dot, precision=jax.lax.Precision.HIGHEST)


# --------------------------------- kernels ----------------------------------
def _gru_gates(g, h_prev):
    """g: (128, nb) = [r_pre | z_pre | gi_n | gh_n] rows; h_prev: (32, nb)."""
    H = HIDDEN
    r = jax.nn.sigmoid(g[0:H, :])
    z = jax.nn.sigmoid(g[H:2 * H, :])
    n = jnp.tanh(g[2 * H:3 * H, :] + r * g[3 * H:4 * H, :])
    return (1.0 - z) * n + z * h_prev


def _critic(h_new, critic_ref):
    """Critic head as a VPU mul + sublane reduction (no 1-row MXU push)."""
    H = HIDDEN
    return (jnp.sum(h_new * critic_ref[0:H, :], axis=0, keepdims=True)
            + critic_ref[H:H + 1, :])


def net_step_kernel(x_ref, w_ref, critic_ref, h_out_ref, v_out_ref):
    """Single-step branch.  x_ref: (48, nb) = [masked_h | feat | 1 | 0];
    w_ref: (128, 48) fused gate weight; outputs (32, nb) and (1, nb)."""
    f32 = jnp.float32
    x = x_ref[...].astype(f32)                                   # (48, nb)
    g = jnp.dot(w_ref[...], x, preferred_element_type=f32)       # (128, nb)
    h_new = _gru_gates(g, x[SS_H0:SS_H0 + HIDDEN, :])
    h_out_ref[...] = h_new
    v_out_ref[...] = _critic(h_new, critic_ref)


def net_seq_kernel(obs_ref, h0_ref, w_obs_ref, w_h_ref, critic_ref,
                   x_out_ref, v_out_ref, h_out_ref, h_scr):
    """Sequence branch.  grid = (batch_blocks, T); hidden carried in VMEM."""
    f32 = jnp.float32
    t = pl.program_id(1)

    @pl.when(t == 0)
    def _():
        h_scr[...] = h0_ref[...]

    obs = obs_ref[0].astype(f32)                                 # (16, nb)
    mask = obs[SQ_MASK:SQ_MASK + 1, :]                           # (1, nb)
    h_prev = h_scr[...] * mask                                   # (32, nb)
    g = (jnp.dot(w_obs_ref[...], obs, preferred_element_type=f32)
         + jnp.dot(w_h_ref[...], h_prev, preferred_element_type=f32))
    h_new = _gru_gates(g, h_prev)
    h_scr[...] = h_new

    x_out_ref[0] = h_new
    v_out_ref[0] = _critic(h_new, critic_ref)

    @pl.when(t == pl.num_programs(1) - 1)
    def _():
        h_out_ref[...] = h_new


# ------------------------- parameters & host fusion -------------------------
def make_params(key):
    """Original PyTorch-layout parameters."""
    ks = jax.random.split(key, 8)

    def lin(k, out_dim, in_dim, gain=0.01):
        return gain * jax.random.normal(k, (out_dim, in_dim), jnp.float32)

    return dict(
        tgt_w=lin(ks[0], 32, N_GOAL),          tgt_b=jnp.zeros((1, 32), jnp.float32),
        delta_w=lin(ks[1], 32, N_DELTA_GPS),   delta_b=jnp.zeros((1, 32), jnp.float32),
        compass_w=lin(ks[2], 32, N_COMPASS),   compass_b=jnp.zeros((1, 32), jnp.float32),
        pa_emb=jax.random.normal(ks[3], (N_ACT, 32), jnp.float32),
        bump_emb=jax.random.normal(ks[4], (N_BUMP, 32), jnp.float32),
        w_ih=0.1 * jax.random.normal(ks[5], (3 * HIDDEN, RNN_INPUT), jnp.float32),
        w_hh=0.1 * jax.random.normal(ks[6], (3 * HIDDEN, HIDDEN), jnp.float32),
        b_ih=jnp.zeros((1, 3 * HIDDEN), jnp.float32),
        b_hh=jnp.zeros((1, 3 * HIDDEN), jnp.float32),
        critic_w=lin(ks[7], 1, HIDDEN),        critic_b=jnp.zeros((1, 1), jnp.float32),
    )


def fuse_params(p):
    """One-time, exact (HIGHEST-precision) host-side fusion and packing.

    Folds the 5 feature embeddings into the GRU input projection and packs the
    GRU input + hidden projections into a single 128-row gate weight so the
    kernel needs exactly one MXU push per block (two in sequence mode, where
    the hidden path comes from VMEM scratch)."""
    f32 = jnp.float32
    H = HIDDEN
    W_ih = p['w_ih'].astype(f32)             # (96, 160) rows = [r | z | n]
    W_hh = p['w_hh'].astype(f32)             # (96, 32)
    b_ih = p['b_ih'].astype(f32)[0]          # (96,)
    b_hh = p['b_hh'].astype(f32)[0]          # (96,)

    # W_ih column blocks act on [tgt 0:32 | pa 32:64 | bump 64:96 |
    #                            dgps 96:128 | comp 128:160].
    # Fused feature weight columns (must match _feature_rows_t order):
    #   [pointgoal(2), delta_gps(2), compass(2), pa_onehot(5), bump_onehot(2)]
    Wf = jnp.concatenate([
        _hdot(W_ih[:, 0:32],    p['tgt_w']),        # (96, 2)
        _hdot(W_ih[:, 96:128],  p['delta_w']),      # (96, 2)
        _hdot(W_ih[:, 128:160], p['compass_w']),    # (96, 2)
        _hdot(W_ih[:, 32:64],   p['pa_emb'].T),     # (96, 5)
        _hdot(W_ih[:, 64:96],   p['bump_emb'].T),   # (96, 2)
    ], axis=1)                                       # (96, 13)
    bf = (b_ih
          + _hdot(W_ih[:, 0:32],    p['tgt_b'][0])
          + _hdot(W_ih[:, 96:128],  p['delta_b'][0])
          + _hdot(W_ih[:, 128:160], p['compass_b'][0]))        # (96,)

    # ---- single-step packed gate weight (128, 48); columns mirror slab rows.
    wp = jnp.zeros((G4, SS_ROWS), f32)
    # r rows
    wp = wp.at[0:H, SS_H0:SS_H0 + H].set(W_hh[0:H])
    wp = wp.at[0:H, SS_FEAT:SS_FEAT + N_FEAT].set(Wf[0:H])
    wp = wp.at[0:H, SS_ONES].set(bf[0:H] + b_hh[0:H])
    # z rows
    wp = wp.at[H:2 * H, SS_H0:SS_H0 + H].set(W_hh[H:2 * H])
    wp = wp.at[H:2 * H, SS_FEAT:SS_FEAT + N_FEAT].set(Wf[H:2 * H])
    wp = wp.at[H:2 * H, SS_ONES].set(bf[H:2 * H] + b_hh[H:2 * H])
    # gi_n rows (input-side n pre-activation only)
    wp = wp.at[2 * H:3 * H, SS_FEAT:SS_FEAT + N_FEAT].set(Wf[2 * H:3 * H])
    wp = wp.at[2 * H:3 * H, SS_ONES].set(bf[2 * H:3 * H])
    # gh_n rows (hidden-side n pre-activation; b_hn MUST stay on this side)
    wp = wp.at[3 * H:4 * H, SS_H0:SS_H0 + H].set(W_hh[2 * H:3 * H])
    wp = wp.at[3 * H:4 * H, SS_ONES].set(b_hh[2 * H:3 * H])

    # ---- sequence-mode weights (obs path and hidden path kept separate
    #      because the hidden path reads the VMEM-resident state).
    w_obs = jnp.zeros((G4, SQ_ROWS), f32)
    w_obs = w_obs.at[0:3 * H, SQ_FEAT:SQ_FEAT + N_FEAT].set(Wf)
    w_obs = w_obs.at[0:H, SQ_ONES].set(bf[0:H] + b_hh[0:H])
    w_obs = w_obs.at[H:2 * H, SQ_ONES].set(bf[H:2 * H] + b_hh[H:2 * H])
    w_obs = w_obs.at[2 * H:3 * H, SQ_ONES].set(bf[2 * H:3 * H])
    w_obs = w_obs.at[3 * H:4 * H, SQ_ONES].set(b_hh[2 * H:3 * H])

    w_h = jnp.zeros((G4, H), f32)
    w_h = w_h.at[0:2 * H, :].set(W_hh[0:2 * H])
    w_h = w_h.at[3 * H:4 * H, :].set(W_hh[2 * H:3 * H])

    critic = jnp.zeros((CRITIC_ROWS, 1), f32)
    critic = critic.at[0:H, 0].set(p['critic_w'][0])
    critic = critic.at[H, 0].set(p['critic_b'][0, 0])

    return dict(wp=wp, w_obs=w_obs, w_h=w_h, critic=critic)


# --------------------------------- wrappers ---------------------------------
def _round_up(x, m):
    return ((x + m - 1) // m) * m


def _pick_blocks(n, block_n):
    """Lane-aligned batch blocking.  >= 2 blocks for big batches so v7x
    megacore ('parallel' axis) uses both TensorCores; block size capped so the
    double-buffered VMEM footprint stays well under v7x's 32 MiB scoped
    default."""
    n_pad = _round_up(max(n, 1), LANE)
    n_blocks = max(1, -(-n_pad // block_n))
    if n_blocks == 1 and n_pad > 8 * LANE:
        n_blocks = 2
    nb = _round_up(-(-n_pad // n_blocks), LANE)
    return nb, nb * n_blocks


def _feature_rows_t(observations, prev_actions, masks):
    """Fused input features, batch-in-lanes.  Returns transposed row pieces in
    the order [pointgoal, delta_gps, compass, pa_onehot, bump_onehot] (must
    match fuse_params) plus the (1, R) mask row.  (prev+1)*mask is an exact
    small integer in f32."""
    f32 = jnp.float32
    m = masks.astype(f32)
    pa_idx = ((prev_actions.astype(f32) + 1.0) * m).astype(jnp.int32)[:, 0]
    bump = observations['bump'].astype(jnp.int32)[:, 0]
    rows = [
        observations['pointgoal'].astype(f32).T,                 # (2, R)
        observations['delta_gps'].astype(f32).T,                 # (2, R)
        observations['compass'].astype(f32).T,                   # (2, R)
        jax.nn.one_hot(pa_idx, N_ACT, dtype=f32, axis=0),        # (5, R)
        jax.nn.one_hot(bump, N_BUMP, dtype=f32, axis=0),         # (2, R)
    ]
    return rows, m.T                                             # (1, R)


def _forward_step(observations, hidden_t, prev_actions, masks, fused,
                  block_n, io_dtype):
    f32 = jnp.float32
    N = masks.shape[0]
    nb, n_final = _pick_blocks(N, block_n)

    rows, mask_row = _feature_rows_t(observations, prev_actions, masks)
    h_masked = hidden_t * mask_row                               # (32, N)
    pieces = ([h_masked] + rows
              + [jnp.ones((1, N), f32),
                 jnp.zeros((SS_ROWS - SS_ONES - 1, N), f32)])
    slab = jnp.concatenate(pieces, axis=0)                       # (48, N)
    if n_final != N:
        # Lane padding appended inside the same copy fusion as the concat
        # above (no full-array jnp.pad re-pass); pad columns are all-zero.
        slab = jnp.concatenate(
            [slab, jnp.zeros((SS_ROWS, n_final - N), f32)], axis=1)
    slab = slab.astype(io_dtype)

    grid = (n_final // nb,)
    h_new_t, value_t = pl.pallas_call(
        net_step_kernel,
        grid=grid,
        out_shape=(jax.ShapeDtypeStruct((HIDDEN, n_final), f32),
                   jax.ShapeDtypeStruct((1, n_final), f32)),
        in_specs=[
            pl.BlockSpec((SS_ROWS, nb), lambda i: (0, i)),
            pl.BlockSpec((G4, SS_ROWS), lambda i: (0, 0)),       # resident
            pl.BlockSpec((CRITIC_ROWS, 1), lambda i: (0, 0)),    # resident
        ],
        out_specs=(pl.BlockSpec((HIDDEN, nb), lambda i: (0, i)),
                   pl.BlockSpec((1, nb), lambda i: (0, i))),
        compiler_params=pltpu.CompilerParams(
            dimension_semantics=("parallel",)),
    )(slab, fused['wp'], fused['critic'])

    # Padded lanes carry finite garbage h_new; always slice them off here.
    return value_t[:, :N], h_new_t[:, :N]


def _forward_seq(observations, hidden_t, prev_actions, masks, fused,
                 T, N, block_n, io_dtype):
    f32 = jnp.float32
    R = T * N
    nb, n_final = _pick_blocks(N, block_n)

    rows, mask_row = _feature_rows_t(observations, prev_actions, masks)
    pieces = rows + [jnp.ones((1, R), f32), mask_row,
                     jnp.zeros((SQ_ROWS - SQ_MASK - 1, R), f32)]
    obs = jnp.concatenate(pieces, axis=0)                        # (16, T*N)
    obs = obs.reshape(SQ_ROWS, T, N).transpose(1, 0, 2)          # (T, 16, N)
    if n_final != N:
        obs = jnp.concatenate(
            [obs, jnp.zeros((T, SQ_ROWS, n_final - N), f32)], axis=2)
        hidden_t = jnp.concatenate(
            [hidden_t, jnp.zeros((HIDDEN, n_final - N), f32)], axis=1)
    obs = obs.astype(io_dtype)

    grid = (n_final // nb, T)
    x_t, v_t, h_last_t = pl.pallas_call(
        net_seq_kernel,
        grid=grid,
        out_shape=(jax.ShapeDtypeStruct((T, HIDDEN, n_final), f32),
                   jax.ShapeDtypeStruct((T, 1, n_final), f32),
                   jax.ShapeDtypeStruct((HIDDEN, n_final), f32)),
        in_specs=[
            pl.BlockSpec((1, SQ_ROWS, nb), lambda i, t: (t, 0, i)),
            pl.BlockSpec((HIDDEN, nb), lambda i, t: (0, i)),     # resident / i
            pl.BlockSpec((G4, SQ_ROWS), lambda i, t: (0, 0)),    # resident
            pl.BlockSpec((G4, HIDDEN), lambda i, t: (0, 0)),     # resident
            pl.BlockSpec((CRITIC_ROWS, 1), lambda i, t: (0, 0)),
        ],
        out_specs=(
            pl.BlockSpec((1, HIDDEN, nb), lambda i, t: (t, 0, i)),
            pl.BlockSpec((1, 1, nb), lambda i, t: (t, 0, i)),
            pl.BlockSpec((HIDDEN, nb), lambda i, t: (0, i)),
        ),
        scratch_shapes=[pltpu.VMEM((HIDDEN, nb), f32)],          # carried h
        compiler_params=pltpu.CompilerParams(
            dimension_semantics=("parallel", "arbitrary")),
    )(obs, hidden_t, fused['w_obs'], fused['w_h'], fused['critic'])

    x = x_t[:, :, :N].transpose(0, 2, 1).reshape(R, HIDDEN)
    value = v_t[:, 0, :N].reshape(R, 1)
    return value, x, h_last_t[:, :N]


def net_forward(observations, rnn_hidden_states, prev_actions, masks, fused,
                *, block_n=8192, io_dtype=jnp.float32):
    """Net.forward.  observations: dict of (R, d); rnn_hidden_states:
    (1, N, H); prev_actions, masks: (R, 1).  R == N selects the single-step
    rollout branch; R == T*N the sequence (training) branch, evaluated in one
    kernel with the hidden state resident in VMEM across all T steps.
    Returns (value, x, rnn_hidden_states', None) exactly like the module.
    io_dtype=jnp.bfloat16 halves obs-slab HBM traffic (v6e/v7x); gate math and
    the carried hidden state stay float32 (keep f32 on v5e).
    NOTE: in a rollout loop, keep the state in the kernel's (H, N) layout
    (use _forward_step directly) to avoid the boundary transposes."""
    f32 = jnp.float32
    N = rnn_hidden_states.shape[1]
    R = masks.shape[0]
    hidden_t = rnn_hidden_states[0].astype(f32).T                # (H, N)
    if R == N:
        value_t, h_t = _forward_step(observations, hidden_t, prev_actions,
                                     masks, fused, block_n, io_dtype)
        x = h_t.T
        # x and the new hidden state are the same tensor for a 1-step GRU.
        return value_t.T, x, x[None], None
    T = R // N
    value, x, h_t = _forward_seq(observations, hidden_t, prev_actions, masks,
                                 fused, T, N, block_n, io_dtype)
    return value, x, h_t.T[None], None


# --------------------- pure-JAX reference (PyTorch math) --------------------
def net_reference(observations, rnn_hidden_states, prev_actions, masks, p):
    """Per-step masked GRU loop; forward-equivalent to both branches of the
    PyTorch forward_rnn (see module docstring)."""
    f32 = jnp.float32
    H = HIDDEN
    N = rnn_hidden_states.shape[1]
    R = masks.shape[0]
    T = R // N
    m = masks.astype(f32)
    tgt = _hdot(observations['pointgoal'].astype(f32), p['tgt_w'].T) + p['tgt_b']
    pa_idx = ((prev_actions.astype(f32) + 1.0) * m).astype(jnp.int32)[:, 0]
    pa_e = p['pa_emb'][pa_idx]
    b_e = p['bump_emb'][observations['bump'].astype(jnp.int32)[:, 0]]
    dgps = _hdot(observations['delta_gps'].astype(f32), p['delta_w'].T) + p['delta_b']
    comp = _hdot(observations['compass'].astype(f32), p['compass_w'].T) + p['compass_b']
    x = jnp.concatenate([tgt, pa_e, b_e, dgps, comp], axis=1)    # (R, 160)
    x = x.reshape(T, N, RNN_INPUT)
    m = m.reshape(T, N, 1)
    h = rnn_hidden_states[0].astype(f32)
    outs = []
    for t in range(T):
        hm = h * m[t]
        gi = _hdot(x[t], p['w_ih'].T) + p['b_ih']
        gh = _hdot(hm, p['w_hh'].T) + p['b_hh']
        r = jax.nn.sigmoid(gi[:, 0:H] + gh[:, 0:H])
        z = jax.nn.sigmoid(gi[:, H:2 * H] + gh[:, H:2 * H])
        n = jnp.tanh(gi[:, 2 * H:3 * H] + r * gh[:, 2 * H:3 * H])
        h = (1.0 - z) * n + z * hm
        outs.append(h)
    xs = jnp.concatenate(outs, axis=0)                           # (T*N, H)
    value = _hdot(xs, p['critic_w'].T) + p['critic_b']
    return value, xs, h


# ----------------------------------- main -----------------------------------
def _make_inputs(key, T, N):
    ko = jax.random.split(key, 7)
    R = T * N
    observations = {
        'pointgoal': jax.random.normal(ko[0], (R, N_GOAL), jnp.float32),
        'delta_gps': jax.random.normal(ko[1], (R, N_DELTA_GPS), jnp.float32),
        'compass':   jax.random.normal(ko[2], (R, N_COMPASS), jnp.float32),
        'bump':      jax.random.randint(ko[3], (R, 1), 0, 2, jnp.int32),
    }
    prev_actions = jax.random.randint(ko[4], (R, 1), 0, 4, jnp.int32)
    masks = (jax.random.uniform(ko[5], (R, 1)) > 0.3).astype(jnp.float32)
    hidden = jax.random.normal(ko[6], (1, N, HIDDEN), jnp.float32)
    return observations, prev_actions, masks, hidden


if __name__ == "__main__":
    key = jax.random.PRNGKey(0)
    k_param, k_ss, k_sq = jax.random.split(key, 3)
    params = make_params(k_param)
    fused = fuse_params(params)          # one-time, exact host-side fusion

    ATOL = RTOL = 5e-5                   # tight: the f32 path is an exact refactor

    # --- single-step rollout branch ---
    N = 8
    obs, prev, m, h0 = _make_inputs(k_ss, T=1, N=N)
    value, x, hidden, _ = net_forward(obs, h0, prev, m, fused)
    jax.block_until_ready((value, x, hidden))
    assert value.shape == (N, 1)
    assert x.shape == (N, HIDDEN)
    assert hidden.shape == (1, N, HIDDEN)
    v_ref, x_ref, h_ref = net_reference(obs, h0, prev, m, params)
    assert jnp.allclose(x, x_ref, atol=ATOL, rtol=RTOL)
    assert jnp.allclose(hidden[0], h_ref, atol=ATOL, rtol=RTOL)
    assert jnp.allclose(value, v_ref, atol=ATOL, rtol=RTOL)

    # --- bf16 I/O variant (v6e/v7x mem-bound win), validated deliberately ---
    value_b, x_b, _, _ = net_forward(obs, h0, prev, m, fused,
                                     io_dtype=jnp.bfloat16)
    jax.block_until_ready((value_b, x_b))
    assert jnp.allclose(x_b, x_ref, atol=2e-2, rtol=2e-2)

    # --- sequence (training) branch: T steps inside one kernel ---
    T, N2 = 6, 8
    obs2, prev2, m2, h02 = _make_inputs(k_sq, T=T, N=N2)
    value2, x2, hidden2, _ = net_forward(obs2, h02, prev2, m2, fused)
    jax.block_until_ready((value2, x2, hidden2))
    assert value2.shape == (T * N2, 1)
    assert x2.shape == (T * N2, HIDDEN)
    assert hidden2.shape == (1, N2, HIDDEN)
    v2_ref, x2_ref, h2_ref = net_reference(obs2, h02, prev2, m2, params)
    assert jnp.allclose(x2, x2_ref, atol=ATOL, rtol=RTOL)
    assert jnp.allclose(hidden2[0], h2_ref, atol=ATOL, rtol=RTOL)
    assert jnp.allclose(value2, v2_ref, atol=ATOL, rtol=RTOL)

    print("KERNEL_OK")
</pallas_src>

<mosaic_0001>
module attributes {stable_mosaic.version = 11 : i64} {
  func.func @net_step_kernel(%arg0: i32, %arg1: memref<48x128xf32, #tpu.memory_space<vmem>>, %arg2: memref<128x48xf32, #tpu.memory_space<vmem>>, %arg3: memref<40x1xf32, #tpu.memory_space<vmem>>, %arg4: memref<32x128xf32, #tpu.memory_space<vmem>>, %arg5: memref<1x128xf32, #tpu.memory_space<vmem>>) attributes {dimension_semantics = [#tpu.dimension_semantics<parallel>], iteration_bounds = array<i64: 1>, scalar_prefetch = 0 : i64, scratch_operands = 0 : i64, tpu.core_type = #tpu.core_type<tc>, window_params = [{transform_indices = @transform_0, window_bounds = array<i64: 48, 128>}, {pipeline_mode = #tpu.pipeline_mode<synchronous>, transform_indices = @transform_1, window_bounds = array<i64: 128, 48>}, {pipeline_mode = #tpu.pipeline_mode<synchronous>, transform_indices = @transform_2, window_bounds = array<i64: 40, 1>}, {transform_indices = @transform_3, window_bounds = array<i64: 32, 128>}, {transform_indices = @transform_4, window_bounds = array<i64: 1, 128>}]} {
    %c0 = arith.constant 0 : index
    %c0_0 = arith.constant 0 : index
    %0 = vector.load %arg1[%c0, %c0_0] : memref<48x128xf32, #tpu.memory_space<vmem>>, vector<48x128xf32>
    %c0_1 = arith.constant 0 : index
    %c0_2 = arith.constant 0 : index
    %1 = vector.load %arg2[%c0_1, %c0_2] : memref<128x48xf32, #tpu.memory_space<vmem>>, vector<128x48xf32>
    %cst = arith.constant dense<0.000000e+00> : vector<128x128xf32>
    %2 = tpu.matmul %1, %0, %cst {dimension_numbers = #tpu.dot_dimension_numbers<[1], [0], [0], [1], [0, 0, 1, 1], [], []>} : vector<128x48xf32>, vector<48x128xf32>, vector<128x128xf32> -> vector<128x128xf32>
    %3 = vector.extract_strided_slice %0 {offsets = [0, 0], sizes = [32, 128], strides = [1, 1]} : vector<48x128xf32> to vector<32x128xf32>
    %4 = vector.extract_strided_slice %2 {offsets = [0, 0], sizes = [32, 128], strides = [1, 1]} : vector<128x128xf32> to vector<32x128xf32>
    %5 = arith.negf %4 : vector<32x128xf32>
    %6 = math.exp %5 : vector<32x128xf32>
    %cst_3 = arith.constant 1.000000e+00 : f32
    %7 = vector.broadcast %cst_3 : f32 to vector<32x128xf32>
    %8 = arith.addf %7, %6 : vector<32x128xf32>
    %9 = arith.divf %7, %8 : vector<32x128xf32>
    %10 = vector.extract_strided_slice %2 {offsets = [32, 0], sizes = [32, 128], strides = [1, 1]} : vector<128x128xf32> to vector<32x128xf32>
    %11 = arith.negf %10 : vector<32x128xf32>
    %12 = math.exp %11 : vector<32x128xf32>
    %cst_4 = arith.constant 1.000000e+00 : f32
    %13 = vector.broadcast %cst_4 : f32 to vector<32x128xf32>
    %14 = arith.addf %13, %12 : vector<32x128xf32>
    %15 = arith.divf %13, %14 : vector<32x128xf32>
    %16 = vector.extract_strided_slice %2 {offsets = [64, 0], sizes = [32, 128], strides = [1, 1]} : vector<128x128xf32> to vector<32x128xf32>
    %17 = vector.extract_strided_slice %2 {offsets = [96, 0], sizes = [32, 128], strides = [1, 1]} : vector<128x128xf32> to vector<32x128xf32>
    %18 = arith.mulf %9, %17 : vector<32x128xf32>
    %19 = arith.addf %16, %18 : vector<32x128xf32>
    %20 = math.tanh %19 : vector<32x128xf32>
    %cst_5 = arith.constant 1.000000e+00 : f32
    %21 = vector.broadcast %cst_5 : f32 to vector<32x128xf32>
    %22 = arith.subf %21, %15 : vector<32x128xf32>
    %23 = arith.mulf %22, %20 : vector<32x128xf32>
    %24 = arith.mulf %15, %3 : vector<32x128xf32>
    %25 = arith.addf %23, %24 : vector<32x128xf32>
    %c0_6 = arith.constant 0 : index
    %c0_7 = arith.constant 0 : index
    %26 = vector.load %arg4[%c0_6, %c0_7] : memref<32x128xf32, #tpu.memory_space<vmem>>, vector<32x128xf32>
    tpu.vector_store %arg4[%c0_6, %c0_7], %25 {strides = array<i32>} : memref<32x128xf32, #tpu.memory_space<vmem>>, vector<32x128xf32>,
    %c0_8 = arith.constant 0 : index
    %c0_9 = arith.constant 0 : index
    %27 = vector.load %arg3[%c0_8, %c0_9] : memref<40x1xf32, #tpu.memory_space<vmem>>, vector<32x1xf32>
    %28 = vector.broadcast %27 : vector<32x1xf32> to vector<32x128xf32>
    %29 = arith.mulf %25, %28 : vector<32x128xf32>
    %cst_10 = arith.constant dense<0.000000e+00> : vector<128xf32>
    %30 = vector.multi_reduction <add>, %29, %cst_10 [0] : vector<32x128xf32> to vector<128xf32>
    %31 = vector.shape_cast %30 : vector<128xf32> to vector<1x128xf32>
    %c32 = arith.constant 32 : index
    %c0_11 = arith.constant 0 : index
    %32 = vector.load %arg3[%c32, %c0_11] : memref<40x1xf32, #tpu.memory_space<vmem>>, vector<1x1xf32>
    %33 = vector.broadcast %32 : vector<1x1xf32> to vector<1x128xf32>
    %34 = arith.addf %31, %33 : vector<1x128xf32>
    %c0_12 = arith.constant 0 : index
    %c0_13 = arith.constant 0 : index
    %35 = vector.load %arg5[%c0_12, %c0_13] : memref<1x128xf32, #tpu.memory_space<vmem>>, vector<1x128xf32>
    tpu.vector_store %arg5[%c0_12, %c0_13], %34 {strides = array<i32>} : memref<1x128xf32, #tpu.memory_space<vmem>>, vector<1x128xf32>,
    return
  }
  func.func @transform_0(%arg0: i32) -> (i32, i32) {
    %c0_i32 = arith.constant 0 : i32
    %c0_i32_0 = arith.constant 0 : i32
    return %c0_i32, %arg0 : i32, i32
  }
  func.func @transform_1(%arg0: i32) -> (i32, i32) {
    %c0_i32 = arith.constant 0 : i32
    %c0_i32_0 = arith.constant 0 : i32
    %c0_i32_1 = arith.constant 0 : i32
    return %c0_i32, %c0_i32_0 : i32, i32
  }
  func.func @transform_2(%arg0: i32) -> (i32, i32) {
    %c0_i32 = arith.constant 0 : i32
    %c0_i32_0 = arith.constant 0 : i32
    %c0_i32_1 = arith.constant 0 : i32
    return %c0_i32, %c0_i32_0 : i32, i32
  }
  func.func @transform_3(%arg0: i32) -> (i32, i32) {
    %c0_i32 = arith.constant 0 : i32
    %c0_i32_0 = arith.constant 0 : i32
    return %c0_i32, %arg0 : i32, i32
  }
  func.func @transform_4(%arg0: i32) -> (i32, i32) {
    %c0_i32 = arith.constant 0 : i32
    %c0_i32_0 = arith.constant 0 : i32
    return %c0_i32, %arg0 : i32, i32
  }
}

</mosaic_0001>

<llo_original>
// kernel: tpu_custom_call.1
$region0: #{tpu_custom_call.1}
  #allocation0 [shape = 'u32[]', space=smem, size = 0x4, offset = 0x4, fixed_abs, tag = 'smem constant byte address 0x4 - core index']
  #allocation1 [shape = 'u32[144,128]{1,0:T(1,128)}', space=vmem, size = 0x12000, scoped, tag = 'internal scratch']
  %s0 = inlined_call_operand.vmem [shape: f32[48,128], index: 0, kind: input, shape index: {}]
  %s1 = inlined_call_operand.vmem [shape: f32[128,48], index: 1, kind: input, shape index: {}]
  %s2 = inlined_call_operand.vmem [shape: f32[40,1], index: 2, kind: input, shape index: {}]
  %s3 = inlined_call_operand.hbm [shape: f32[32,128], index: 3, kind: output, shape index: {0}]
  %s4 = inlined_call_operand.hbm [shape: f32[1,128], index: 4, kind: output, shape index: {1}]
  %5 = xla_tuple %s3, %s4
  %s6 = sld [smem:[#allocation0]]
  $region30: #{tpu_custom_call.1} parent=0
    _
  %s8 = ssub.s32 1, %s6
  %s9 = scalar_select 0, %s8, %s6
  $region1: #{tpu_custom_call.1} parent=0
    #allocation2 [shape = 'u8[16384]{0}', space=vmem, size = 0x4000, scoped, tag = 'output window, operand 0, single buffered']
    #allocation3 [shape = 's32[1]{0}', space=sflag, size = 0x4, scoped, tag = 'scoped memory for tpu_custom_call.1']
    #allocation4 [shape = 'u8[512]{0}', space=vmem, size = 0x400, scoped, tag = 'output window, operand 1, single buffered']
    #allocation5 [shape = 's32[1]{0}', space=sflag, size = 0x4, scoped, tag = 'scoped memory for tpu_custom_call.1']
    %10 = vsyncpa [#allocation3], 0
    %11 = vsyncpa [#allocation5], 0
    // Predicated region
    $region2: #{tpu_custom_call.1} parent=1 // pred_check
      _
    $region3: #{tpu_custom_call.1} parent=1 // pred_check_branch
      %13 = sbr.rel (0) target = $region5
    $region4: #{tpu_custom_call.1} parent=1 // pred_region
      _
    $region5: #{tpu_custom_call.1} parent=1 // pred_fallthru
      _
    // Predicated region
    $region6: #{tpu_custom_call.1} parent=1 // pred_check
      _
    $region7: #{tpu_custom_call.1} parent=1 // pred_check_branch
      %15 = sbr.rel (0) target = $region9
    $region8: #{tpu_custom_call.1} parent=1 // pred_region
      _
    $region9: #{tpu_custom_call.1} parent=1 // pred_fallthru
      _
    // Predicated region
    $region10: #{tpu_custom_call.1} parent=1 // pred_check
      _
    $region11: #{tpu_custom_call.1} parent=1 // pred_check_branch
      %17 = sbr.rel (0) target = $region13
    $region12: #{tpu_custom_call.1} parent=1 // pred_region
      _
    $region13: #{tpu_custom_call.1} parent=1 // pred_fallthru
      _
    %v18 = vld [vmem:[%s0] sm:$0xff]
    %v19 = vld [vmem:[%s0 + $0x8] sm:$0xff]
    %v20 = vld [vmem:[%s0 + $0x10] sm:$0xff]
    %v21 = vld [vmem:[%s0 + $0x18] sm:$0xff]
    %v22 = vld [vmem:[%s0 + $0x20] sm:$0xff]
    %v23 = vld [vmem:[%s0 + $0x28] sm:$0xff]
    %v24 = vld [vmem:[%s1] sm:$0xff]
    %v25 = vld [vmem:[%s1 + $0x8] sm:$0xff]
    %v26 = vld [vmem:[%s1 + $0x10] sm:$0xff]
    %v27 = vld [vmem:[%s1 + $0x18] sm:$0xff]
    %v28 = vld [vmem:[%s1 + $0x20] sm:$0xff]
    %v29 = vld [vmem:[%s1 + $0x28] sm:$0xff]
    %v30 = vld [vmem:[%s1 + $0x30] sm:$0xff]
    %v31 = vld [vmem:[%s1 + $0x38] sm:$0xff]
    %v32 = vld [vmem:[%s1 + $0x40] sm:$0xff]
    %v33 = vld [vmem:[%s1 + $0x48] sm:$0xff]
    %v34 = vld [vmem:[%s1 + $0x50] sm:$0xff]
    %v35 = vld [vmem:[%s1 + $0x58] sm:$0xff]
    %v36 = vld [vmem:[%s1 + $0x60] sm:$0xff]
    %v37 = vld [vmem:[%s1 + $0x68] sm:$0xff]
    %v38 = vld [vmem:[%s1 + $0x70] sm:$0xff]
    %v39 = vld [vmem:[%s1 + $0x78] sm:$0xff]
    %vm40 = vcmask 392192
    %v42 = vsel %vm40, %v24, 0
    %v45 = vsel %vm40, %v25, 0
    %v48 = vsel %vm40, %v26, 0
    %v51 = vsel %vm40, %v27, 0
    %v54 = vsel %vm40, %v28, 0
    %v57 = vsel %vm40, %v29, 0
    %v60 = vsel %vm40, %v30, 0
    %v63 = vsel %vm40, %v31, 0
    %v66 = vsel %vm40, %v32, 0
    %v69 = vsel %vm40, %v33, 0
    %v72 = vsel %vm40, %v34, 0
    %v75 = vsel %vm40, %v35, 0
    %v78 = vsel %vm40, %v36, 0
    %v81 = vsel %vm40, %v37, 0
    %v84 = vsel %vm40, %v38, 0
    %v87 = vsel %vm40, %v39, 0
    %89 = vmatprep.subr.mxu0 0.0
    %90 = vmatpush1.msra.mxu0 %v18
    %91 = vmatprep.subr.mxu0 0.0
    %92 = vmatpush1.msra.mxu0 %v19
    %93 = vmatprep.subr.mxu0 0.0
    %94 = vmatpush1.msra.mxu0 %v20
    %95 = vmatprep.subr.mxu0 0.0
    %96 = vmatpush1.msra.mxu0 %v21
    %97 = vmatprep.subr.mxu0 0.0
    %98 = vmatpush1.msra.mxu0 %v22
    %99 = vmatprep.subr.mxu0 0.0
    %100 = vmatpush1.msra.mxu0 %v23
    %101 = vmatprep.subr.mxu0 0.0
    %102 = vmatpush1.msra.mxu0 0.0
    %103 = vmatprep.subr.mxu0 0.0
    %104 = vmatpush1.msra.mxu0 0.0
    %105 = vmatprep.subr.mxu0 0.0
    %106 = vmatpush1.msra.mxu0 0.0
    %107 = vmatprep.subr.mxu0 0.0
    %108 = vmatpush1.msra.mxu0 0.0
    %109 = vmatprep.subr.mxu0 0.0
    %110 = vmatpush1.msra.mxu0 0.0
    %111 = vmatprep.subr.mxu0 0.0
    %112 = vmatpush1.msra.mxu0 0.0
    %113 = vmatprep.subr.mxu0 0.0
    %114 = vmatpush1.msra.mxu0 0.0
    %115 = vmatprep.subr.mxu0 0.0
    %116 = vmatpush1.msra.mxu0 0.0
    %117 = vmatprep.subr.mxu0 0.0
    %118 = vmatpush1.msra.mxu0 0.0
    %119 = vmatprep.subr.mxu0 0.0
    %120 = vmatpush1.msra.mxu0 0.0
    %121 = vmatprep.subr.mxu0 0.0
    %122 = vmatpush1.msra.mxu0 0.0
    %123 = vmatprep.subr.mxu0 0.0
    %124 = vmatpush1.msra.mxu0 0.0
    %125 = vmatprep.subr.mxu0 0.0
    %126 = vmatpush1.msra.mxu0 0.0
    %127 = vmatprep.subr.mxu0 0.0
    %128 = vmatpush1.msra.mxu0 0.0
    %129 = vmatprep.subr.mxu0 0.0
    %130 = vmatpush1.msra.mxu0 0.0
    %131 = vmatprep.subr.mxu0 0.0
    %132 = vmatpush1.msra.mxu0 0.0
    %133 = vmatprep.subr.mxu0 0.0
    %134 = vmatpush1.msra.mxu0 0.0
    %135 = vmatprep.subr.mxu0 0.0
    %136 = vmatpush1.msra.mxu0 0.0
    %137 = vmatprep.subr.mxu0 0.0
    %138 = vmatpush1.msra.mxu0 0.0
    %139 = vmatprep.subr.mxu0 0.0
    %140 = vmatpush1.msra.mxu0 0.0
    %141 = vmatprep.subr.mxu0 0.0
    %142 = vmatpush1.msra.mxu0 0.0
    %143 = vmatprep.subr.mxu0 0.0
    %144 = vmatpush1.msra.mxu0 0.0
    %145 = vmatprep.subr.mxu0 0.0
    %146 = vmatpush1.msra.mxu0 0.0
    %147 = vmatprep.subr.mxu0 0.0
    %148 = vmatpush1.msra.mxu0 0.0
    %149 = vmatprep.subr.mxu0 0.0
    %150 = vmatpush1.msra.mxu0 0.0
    %151 = vmatprep.subr.mxu0 0.0
    %152 = vmatpush1.msra.mxu0 0.0
    %153 = vmatprep.mubr.f32.mxu0 0.0
    %154 = vmatmul.mubr.f32.gmra.mrb[0].mxu0 %v42
    %v155 = vpop.f32.mrb[0].mxu0
    %v156 = vadd.f32 0.0, %v155
    %v157 = vpop.f32.mrb[0].mxu0
    %158 = vmatprep.mubr.f32.mxu0 0.0
    %159 = vmatmul.mubr.f32.gmra.mrb[0].mxu0 %v45
    %v160 = vpop.f32.mrb[0].mxu0
    %v161 = vadd.f32 0.0, %v160
    %v162 = vpop.f32.mrb[0].mxu0
    %163 = vmatprep.mubr.f32.mxu0 0.0
    %164 = vmatmul.mubr.f32.gmra.mrb[0].mxu0 %v48
    %v165 = vpop.f32.mrb[0].mxu0
    %v166 = vadd.f32 0.0, %v165
    %v167 = vpop.f32.mrb[0].mxu0
    %168 = vmatprep.mubr.f32.mxu0 0.0
    %169 = vmatmul.mubr.f32.gmra.mrb[0].mxu0 %v51
    %v170 = vpop.f32.mrb[0].mxu0
    %v171 = vadd.f32 0.0, %v170
    %v172 = vpop.f32.mrb[0].mxu0
    %173 = vmatprep.mubr.f32.mxu0 0.0
    %174 = vmatmul.mubr.f32.gmra.mrb[0].mxu0 %v54
    %v175 = vpop.f32.mrb[0].mxu0
    %v176 = vadd.f32 0.0, %v175
    %v177 = vpop.f32.mrb[0].mxu0
    %178 = vmatprep.mubr.f32.mxu0 0.0
    %179 = vmatmul.mubr.f32.gmra.mrb[0].mxu0 %v57
    %v180 = vpop.f32.mrb[0].mxu0
    %v181 = vadd.f32 0.0, %v180
    %v182 = vpop.f32.mrb[0].mxu0
    %183 = vmatprep.mubr.f32.mxu0 0.0
    %184 = vmatmul.mubr.f32.gmra.mrb[0].mxu0 %v60
    %v185 = vpop.f32.mrb[0].mxu0
    %v186 = vadd.f32 0.0, %v185
    %v187 = vpop.f32.mrb[0].mxu0
    %188 = vmatprep.mubr.f32.mxu0 0.0
    %189 = vmatmul.mubr.f32.gmra.mrb[0].mxu0 %v63
    %v190 = vpop.f32.mrb[0].mxu0
    %v191 = vadd.f32 0.0, %v190
    %v192 = vpop.f32.mrb[0].mxu0
    %193 = vmatprep.mubr.f32.mxu0 0.0
    %194 = vmatmul.mubr.f32.gmra.mrb[0].mxu0 %v66
    %v195 = vpop.f32.mrb[0].mxu0
    %v196 = vadd.f32 0.0, %v195
    %v197 = vpop.f32.mrb[0].mxu0
    %198 = vmatprep.mubr.f32.mxu0 0.0
    %199 = vmatmul.mubr.f32.gmra.mrb[0].mxu0 %v69
    %v200 = vpop.f32.mrb[0].mxu0
    %v201 = vadd.f32 0.0, %v200
    %v202 = vpop.f32.mrb[0].mxu0
    %203 = vmatprep.mubr.f32.mxu0 0.0
    %204 = vmatmul.mubr.f32.gmra.mrb[0].mxu0 %v72
    %v205 = vpop.f32.mrb[0].mxu0
    %v206 = vadd.f32 0.0, %v205
    %v207 = vpop.f32.mrb[0].mxu0
    %208 = vmatprep.mubr.f32.mxu0 0.0
    %209 = vmatmul.mubr.f32.gmra.mrb[0].mxu0 %v75
    %v210 = vpop.f32.mrb[0].mxu0
    %v211 = vadd.f32 0.0, %v210
    %v212 = vpop.f32.mrb[0].mxu0
    %213 = vmatprep.mubr.f32.mxu0 0.0
    %214 = vmatmul.mubr.f32.gmra.mrb[0].mxu0 %v78
    %v215 = vpop.f32.mrb[0].mxu0
    %v216 = vadd.f32 0.0, %v215
    %v217 = vpop.f32.mrb[0].mxu0
    %218 = vmatprep.mubr.f32.mxu0 0.0
    %219 = vmatmul.mubr.f32.gmra.mrb[0].mxu0 %v81
    %v220 = vpop.f32.mrb[0].mxu0
    %v221 = vadd.f32 0.0, %v220
    %v222 = vpop.f32.mrb[0].mxu0
    %223 = vmatprep.mubr.f32.mxu0 0.0
    %224 = vmatmul.mubr.f32.gmra.mrb[0].mxu0 %v84
    %v225 = vpop.f32.mrb[0].mxu0
    %v226 = vadd.f32 0.0, %v225
    %v227 = vpop.f32.mrb[0].mxu0
    %228 = vmatprep.mubr.f32.mxu0 0.0
    %229 = vmatmul.mubr.f32.gmra.mrb[0].mxu0 %v87
    %v230 = vpop.f32.mrb[0].mxu0
    %v231 = vadd.f32 0.0, %v230
    %v232 = vpop.f32.mrb[0].mxu0
    %233 = vdwg.mxu0
    %v234 = vxor.u32 %v156, 2147483648
    %v235 = vxor.u32 %v161, 2147483648
    %v236 = vxor.u32 %v166, 2147483648
    %v237 = vxor.u32 %v171, 2147483648
    %v238 = vmul.f32 %v234, 1.442695
    %v239 = vpow.pop %v238
    %v240 = vmul.f32 %v235, 1.442695
    %v241 = vpow.pop %v240
    %v242 = vmul.f32 %v236, 1.442695
    %v243 = vpow.pop %v242
    %v244 = vmul.f32 %v237, 1.442695
    %v245 = vpow.pop %v244
    %v246 = vadd.f32 %v239, 1.0
    %v247 = vadd.f32 %v241, 1.0
    %v248 = vadd.f32 %v243, 1.0
    %v249 = vadd.f32 %v245, 1.0
    %v250 = vrcp.pop %v246
    %v251 = vmul.f32 1.0, %v250
    %v252 = vrcp.pop %v247
    %v253 = vmul.f32 1.0, %v252
    %v254 = vrcp.pop %v248
    %v255 = vmul.f32 1.0, %v254
    %v256 = vrcp.pop %v249
    %v257 = vmul.f32 1.0, %v256
    %v258 = vxor.u32 %v176, 2147483648
    %v259 = vxor.u32 %v181, 2147483648
    %v260 = vxor.u32 %v186, 2147483648
    %v261 = vxor.u32 %v191, 2147483648
    %v262 = vmul.f32 %v258, 1.442695
    %v263 = vpow.pop %v262
    %v264 = vmul.f32 %v259, 1.442695
    %v265 = vpow.pop %v264
    %v266 = vmul.f32 %v260, 1.442695
    %v267 = vpow.pop %v266
    %v268 = vmul.f32 %v261, 1.442695
    %v269 = vpow.pop %v268
    %v270 = vadd.f32 %v263, 1.0
    %v271 = vadd.f32 %v265, 1.0
    %v272 = vadd.f32 %v267, 1.0
    %v273 = vadd.f32 %v269, 1.0
    %v274 = vrcp.pop %v270
    %v275 = vmul.f32 1.0, %v274
    %v276 = vrcp.pop %v271
    %v277 = vmul.f32 1.0, %v276
    %v278 = vrcp.pop %v272
    %v279 = vmul.f32 1.0, %v278
    %v280 = vrcp.pop %v273
    %v281 = vmul.f32 1.0, %v280
    %v282 = vmul.f32 %v251, %v216
    %v283 = vmul.f32 %v253, %v221
    %v284 = vmul.f32 %v255, %v226
    %v285 = vmul.f32 %v257, %v231
    %v286 = vadd.f32 %v196, %v282
    %v287 = vadd.f32 %v201, %v283
    %v288 = vadd.f32 %v206, %v284
    %v289 = vadd.f32 %v211, %v285
    %v290 = vtanh.pop %v286
    %v291 = vtanh.pop %v287
    %v292 = vtanh.pop %v288
    %v293 = vtanh.pop %v289
    %v294 = vsub.f32 1.0, %v275
    %v295 = vsub.f32 1.0, %v277
    %v296 = vsub.f32 1.0, %v279
    %v297 = vsub.f32 1.0, %v281
    %v298 = vmul.f32 %v294, %v290
    %v299 = vmul.f32 %v295, %v291
    %v300 = vmul.f32 %v296, %v292
    %v301 = vmul.f32 %v297, %v293
    %v302 = vmul.f32 %v275, %v18
    %v303 = vmul.f32 %v277, %v19
    %v304 = vmul.f32 %v279, %v20
    %v305 = vmul.f32 %v281, %v21
    %v306 = vadd.f32 %v298, %v302
    %v307 = vadd.f32 %v299, %v303
    %v308 = vadd.f32 %v300, %v304
    %v309 = vadd.f32 %v301, %v305
    %310 = vst [vmem:[#allocation2] sm:$0xff] %v306
    %311 = vst [vmem:[#allocation2 + $0x8] sm:$0xff] %v307
    %312 = vst [vmem:[#allocation2 + $0x10] sm:$0xff] %v308
    %313 = vst [vmem:[#allocation2 + $0x18] sm:$0xff] %v309
    %v314 = vld [vmem:[%s2] sm:$0xff]
    %v315 = vld [vmem:[%s2 + $0x8] sm:$0xff]
    %v316 = vld [vmem:[%s2 + $0x10] sm:$0xff]
    %v317 = vld [vmem:[%s2 + $0x18] sm:$0xff]
    %319 = vset.pattern.permute.xlu0 0
    %320 = vperm.xlu0 %319, %v314
    %v321 = vpop.permute.xlu0 %320
    %324 = vset.pattern.permute.xlu0 0
    %325 = vperm.xlu0 %324, %v315
    %v326 = vpop.permute.xlu0 %325
    %329 = vset.pattern.permute.xlu0 0
    %330 = vperm.xlu0 %329, %v316
    %v331 = vpop.permute.xlu0 %330
    %334 = vset.pattern.permute.xlu0 0
    %335 = vperm.xlu0 %334, %v317
    %v336 = vpop.permute.xlu0 %335
    %v338 = vmul.f32 %v306, %v321
    %v339 = vmul.f32 %v307, %v326
    %v340 = vmul.f32 %v308, %v331
    %v341 = vmul.f32 %v309, %v336
    %v342 = vadd.f32 %v338, %v339
    %v343 = vadd.f32 %v342, %v340
    %v344 = vadd.f32 %v343, %v341
    %v345 = vrot.slane %v344, 4
    %v346 = vadd.f32 %v344, %v345
    %v347 = vrot.slane %v346, 2
    %v348 = vadd.f32 %v346, %v347
    %v349 = vrot.slane %v348, 1
    %v350 = vadd.f32 %v348, %v349
    %v351 = vld [vmem:[%s2 + $0x20] sm:$0x1]
    %353 = vset.pattern.permute.xlu0 0
    %354 = vperm.xlu0 %353, %v351
    %v355 = vpop.permute.xlu0 %354
    %v357 = vadd.f32 %v350, %v355
    %358 = vst [vmem:[#allocation4] sm:$0x1] %v357
    // Predicated region
    $region14: #{tpu_custom_call.1} parent=1 // pred_check
      _
    $region15: #{tpu_custom_call.1} parent=1 // pred_check_branch
      %360 = sbr.rel (0) target = $region17
    $region16: #{tpu_custom_call.1} parent=1 // pred_region
      %s362 = ssub.s32 512, 512
      %363 = vsyncadd [#allocation3], %s362
      %s364 = sshll.u32 [#allocation2], 4
      %s365 = int_to_ptr.vmem [resolvable:$true] %s364
      %370 = dma.vmem_to_hbm [thread:$0]  %s365, 512, %s3, [#allocation3], 128, 128, 8
    $region17: #{tpu_custom_call.1} parent=1 // pred_fallthru
      _
    // Predicated region
    $region18: #{tpu_custom_call.1} parent=1 // pred_check
      _
    $region19: #{tpu_custom_call.1} parent=1 // pred_check_branch
      %372 = sbr.rel (0) target = $region21
    $region20: #{tpu_custom_call.1} parent=1 // pred_region
      %s374 = ssub.s32 16, 16
      %375 = vsyncadd [#allocation5], %s374
      %s377 = sshll.u32 [#allocation4], 4
      %s378 = int_to_ptr.vmem [resolvable:$true] %s377
      %380 = dma.vmem_to_hbm [thread:$0]  %s378, 16, %s4, [#allocation5]
    $region21: #{tpu_custom_call.1} parent=1 // pred_fallthru
      _
    // Predicated region
    $region22: #{tpu_custom_call.1} parent=1 // pred_check
      _
    $region23: #{tpu_custom_call.1} parent=1 // pred_check_branch
      %382 = sbr.rel (0) target = $region25
    $region24: #{tpu_custom_call.1} parent=1 // pred_region
      %383 = dma.done [#allocation3], 512
    $region25: #{tpu_custom_call.1} parent=1 // pred_fallthru
      _
    // Predicated region
    $region26: #{tpu_custom_call.1} parent=1 // pred_check
      _
    $region27: #{tpu_custom_call.1} parent=1 // pred_check_branch
      %385 = sbr.rel (0) target = $region29
    $region28: #{tpu_custom_call.1} parent=1 // pred_region
      %386 = dma.done [#allocation5], 16
    $region29: #{tpu_custom_call.1} parent=1 // pred_fallthru
      _
    %387 = vsyncpa [#allocation3], 1
    %388 = vsyncpa [#allocation5], 1

</llo_original>
